<compile_context>
chip_gen: v7x
topology: tpu7x:2x2x1
jax: 0.10.0
libtpu: 0.0.40
codegen_flags: <defaults>
</compile_context>

<pallas_src>
import functools

import jax
import jax.numpy as jnp
from jax import lax
from jax.experimental import pallas as pl
from jax.experimental.pallas import tpu as pltpu

BETA = 100.0


def _round_up(x, m):
    return (x + m - 1) // m * m


def _cdiv(a, b):
    return -(-a // b)


def _vmem_capacity_bytes():
    """Physical VMEM of the current TPU generation; conservative fallback."""
    try:
        info = pltpu.get_tpu_info()
        for name in ("vmem_capacity_bytes", "vmem_size_bytes", "vmem_bytes"):
            v = getattr(info, name, None)
            if v:
                return int(v)
    except Exception:
        pass
    return 64 * 1024 * 1024  # v7x physical VMEM — safe lower bound everywhere


def _auto_tile_rows(n_rows, n_lanes, itemsize, vmem_limit_bytes):
    """Largest row tile that fits the VMEM budget, capped so the 1-D grid has
    >= ~4 steps (megacore sharding + DMA/compute overlap)."""
    sub = 8 if itemsize >= 4 else 16            # sublane quantum per dtype
    # Per-row VMEM bytes: up to 3 pipeline buffers of the input tile at native
    # dtype + ~4 full-tile f32 temporaries (cast/scaled x, e, two e*coord
    # products) that the compiler may materialize.
    row_bytes = n_lanes * (3 * itemsize + 4 * 4)
    const_bytes = 2 * (2 * n_lanes * 4)         # (2, L) coords, double-buffered
    budget = max(0, vmem_limit_bytes // 2 - const_bytes)   # 2x headroom
    cap = max(sub, (budget // row_bytes) // sub * sub)
    target = _round_up(max(1, _cdiv(n_rows, 4)), sub)      # aim for >= 4 steps
    return max(sub, min(cap, target))


def _softargmax_kernel(x_ref, coord_ref, out_ref, *, beta, apply_relu):
    # x_ref:     (TR, L)   flattened spatial rows for TR (batch*channel) rows
    # coord_ref: (2, L)    row 0 = pre-scaled row index, row 1 = col index
    # out_ref:   (TR, 2)   [soft_row, soft_col] per row
    x = x_ref[...].astype(jnp.float32)
    if apply_relu:                               # fused ReLU (ExampleDriver path)
        x = jnp.maximum(x, 0.0)
    s = beta * x
    m = jnp.max(s, axis=-1, keepdims=True)       # per-row max
    e = jnp.exp(s - m)                           # EUP
    row_idx = coord_ref[0:1, :]                  # (1, L) sublane-broadcast
    col_idx = coord_ref[1:2, :]
    denom = jnp.sum(e, axis=-1, keepdims=True)               # (TR, 1)
    r_sum = jnp.sum(e * row_idx, axis=-1, keepdims=True)     # (TR, 1)
    c_sum = jnp.sum(e * col_idx, axis=-1, keepdims=True)     # (TR, 1)
    # Exact reciprocal: only a (TR, 1) vector, off the (TR, L) critical path.
    inv = pl.reciprocal(denom, approx=False)
    out_ref[:, 0:1] = (r_sum * inv).astype(out_ref.dtype)
    out_ref[:, 1:2] = (c_sum * inv).astype(out_ref.dtype)


@functools.partial(jax.jit, static_argnames=("tile_rows", "apply_relu", "beta"))
def soft_argmax(x, *, tile_rows=None, apply_relu=False, beta=BETA):
    """SoftArgMax.forward: x (B, C, H, W) -> (B, C, 2) float32."""
    B, C, H, W = x.shape
    L = H * W
    R = B * C
    itemsize = jnp.dtype(x.dtype).itemsize
    sub = 8 if itemsize >= 4 else 16

    vmem_cap = _vmem_capacity_bytes()
    vmem_limit = int(0.75 * vmem_cap)            # ~48 MiB v7x, ~96 MiB v5e/v6e

    if tile_rows is None:
        tile_rows = _auto_tile_rows(R, L, itemsize, vmem_limit)
    tile_rows = max(sub, _round_up(int(tile_rows), sub))

    # No jnp.pad: the grid just covers R with a ragged last block.  The
    # discarded out-of-bounds rows may compute inf/NaN from stale VMEM, but
    # they are masked on writeback and never reach valid output rows.
    num_steps = _cdiv(R, tile_rows)

    x2 = x.reshape(R, L)                         # row-major view, no HBM copy

    # (2, L) pre-scaled coordinates, matching the PyTorch module:
    # (h-1) * linspace(0, 1, h) and (w-1) * linspace(0, 1, w).
    rows = jnp.linspace(0.0, 1.0, H, dtype=jnp.float32) * (H - 1)
    cols = jnp.linspace(0.0, 1.0, W, dtype=jnp.float32) * (W - 1)
    coords = jnp.stack(
        [jnp.broadcast_to(rows[:, None], (H, W)).reshape(L),
         jnp.broadcast_to(cols[None, :], (H, W)).reshape(L)], axis=0)

    # Activation pipeline depth: default 2; bump to 3 when per-step tiles are
    # tiny (short compute window on v6e/v7x) and there are enough steps.
    tile_bytes = tile_rows * L * itemsize
    x_spec = pl.BlockSpec((tile_rows, L), lambda i: (i, 0))
    if num_steps >= 3 and tile_bytes <= (1 << 20):
        try:
            x_spec = pl.BlockSpec((tile_rows, L), lambda i: (i, 0),
                                  pipeline_mode=pl.Buffered(3))
        except TypeError:
            pass  # older BlockSpec without pipeline_mode; default depth-2 is fine

    kernel = functools.partial(_softargmax_kernel,
                               beta=float(beta), apply_relu=bool(apply_relu))
    out2 = pl.pallas_call(
        kernel,
        out_shape=jax.ShapeDtypeStruct((R, 2), jnp.float32),
        grid_spec=pltpu.PrefetchScalarGridSpec(
            num_scalar_prefetch=0,
            grid=(num_steps,),
            in_specs=[
                x_spec,
                pl.BlockSpec((2, L), lambda i: (0, 0)),   # constant coord block
            ],
            out_specs=pl.BlockSpec((tile_rows, 2), lambda i: (i, 0)),
        ),
        compiler_params=pltpu.CompilerParams(
            dimension_semantics=("parallel",),
            vmem_limit_bytes=vmem_limit,
        ),
    )(x2, coords)

    return out2.reshape(B, C, 2)


@jax.jit
def example_driver(x, conv_w, conv_b):
    """ExampleDriver.forward: Conv2d(3, 3, 3, stride=3) -> ReLU -> SoftArgMax."""
    # TODO(synk): the 3x3/stride-3 conv stays an XLA op (no dedicated Pallas
    # conv kernel); the bias-add fuses into the conv epilogue under XLA, and
    # ReLU is fused into the Pallas SoftArgMax kernel so the activation is
    # only read from HBM once.
    y = lax.conv_general_dilated(
        x, conv_w, window_strides=(3, 3), padding="VALID",
        dimension_numbers=("NCHW", "OIHW", "NCHW"))
    y = y + conv_b[None, :, None, None]
    return soft_argmax(y, apply_relu=True)


# ----------------------------- pure-JAX references ---------------------------

def _soft_argmax_ref(x, *, apply_relu=False, beta=BETA):
    B, C, H, W = x.shape
    L = H * W
    xf = x.astype(jnp.float32)
    if apply_relu:
        xf = jnp.maximum(xf, 0.0)
    p = jax.nn.softmax(beta * xf.reshape(B, C, L), axis=-1)
    rows = jnp.linspace(0.0, 1.0, H, dtype=jnp.float32)
    cols = jnp.linspace(0.0, 1.0, W, dtype=jnp.float32)
    idx_r = jnp.broadcast_to(rows[:, None], (H, W)).reshape(1, 1, L)
    idx_c = jnp.broadcast_to(cols[None, :], (H, W)).reshape(1, 1, L)
    r = jnp.sum((H - 1) * p * idx_r, axis=-1)
    c = jnp.sum((W - 1) * p * idx_c, axis=-1)
    return jnp.stack([r, c], axis=-1)


def _example_driver_ref(x, conv_w, conv_b):
    y = lax.conv_general_dilated(
        x, conv_w, window_strides=(3, 3), padding="VALID",
        dimension_numbers=("NCHW", "OIHW", "NCHW"))
    y = y + conv_b[None, :, None, None]
    return _soft_argmax_ref(y, apply_relu=True)


if __name__ == "__main__":
    key = jax.random.PRNGKey(0)
    k_x, k_w, k_b, k_a, k_c, k_d = jax.random.split(key, 6)

    # --- full ExampleDriver, small shape: (2,3,48,48) -> conv/s3 -> (2,3,16,16)
    B, Cin, Hin, Win = 2, 3, 48, 48
    x = jax.random.normal(k_x, (B, Cin, Hin, Win), dtype=jnp.float32)
    conv_w = 0.1 * jax.random.normal(k_w, (3, 3, 3, 3), dtype=jnp.float32)
    conv_b = 0.1 * jax.random.normal(k_b, (3,), dtype=jnp.float32)

    out = jax.block_until_ready(example_driver(x, conv_w, conv_b))
    ref = _example_driver_ref(x, conv_w, conv_b)
    assert out.shape == (B, 3, 2), out.shape
    assert jnp.allclose(out, ref, atol=1e-4, rtol=1e-4), (out, ref)

    # --- standalone SoftArgMax kernel (auto tile size) ------------------------
    xa = jax.random.normal(k_a, (2, 4, 16, 16), dtype=jnp.float32)
    outa = jax.block_until_ready(soft_argmax(xa))
    refa = _soft_argmax_ref(xa)
    assert outa.shape == (2, 4, 2), outa.shape
    assert jnp.allclose(outa, refa, atol=1e-4, rtol=1e-4), (outa, refa)

    # --- non-divisible B*C: ragged last block, no padding (R = 15, grid = 2) --
    xc = jax.random.normal(k_c, (3, 5, 16, 16), dtype=jnp.float32)
    outc = jax.block_until_ready(soft_argmax(xc, tile_rows=8))
    refc = _soft_argmax_ref(xc)
    assert jnp.allclose(outc, refc, atol=1e-4, rtol=1e-4), (outc, refc)

    # --- multi-step grid (R = 32 -> 4 steps, exercises Buffered(3) path) ------
    xd = jax.random.normal(k_d, (4, 8, 16, 16), dtype=jnp.float32)
    outd = jax.block_until_ready(soft_argmax(xd))
    refd = _soft_argmax_ref(xd)
    assert outd.shape == (4, 8, 2), outd.shape
    assert jnp.allclose(outd, refd, atol=1e-4, rtol=1e-4), (outd, refd)

    print("KERNEL_OK")
</pallas_src>

<mosaic_0001>
module attributes {stable_mosaic.version = 11 : i64} {
  func.func @_softargmax_kernel(%arg0: i32, %arg1: memref<8x256xf32, #tpu.memory_space<vmem>>, %arg2: memref<2x256xf32, #tpu.memory_space<vmem>>, %arg3: memref<8x2xf32, #tpu.memory_space<vmem>>) attributes {dimension_semantics = [#tpu.dimension_semantics<parallel>], iteration_bounds = array<i64: 1>, scalar_prefetch = 0 : i64, scratch_operands = 0 : i64, tpu.core_type = #tpu.core_type<tc>, window_params = [{transform_indices = @transform_0, window_bounds = array<i64: 8, 256>}, {pipeline_mode = #tpu.pipeline_mode<synchronous>, transform_indices = @transform_1, window_bounds = array<i64: 2, 256>}, {transform_indices = @transform_2, window_bounds = array<i64: 8, 2>}]} {
    %c0 = arith.constant 0 : index
    %c0_0 = arith.constant 0 : index
    %0 = vector.load %arg1[%c0, %c0_0] : memref<8x256xf32, #tpu.memory_space<vmem>>, vector<8x256xf32>
    %cst = arith.constant 0.000000e+00 : f32
    %1 = vector.broadcast %cst : f32 to vector<8x256xf32>
    %2 = arith.maximumf %0, %1 : vector<8x256xf32>
    %cst_1 = arith.constant 1.000000e+02 : f32
    %3 = vector.broadcast %cst_1 : f32 to vector<8x256xf32>
    %4 = arith.mulf %3, %2 : vector<8x256xf32>
    %cst_2 = arith.constant dense<0xFF800000> : vector<8xf32>
    %5 = vector.multi_reduction <maximumf>, %4, %cst_2 [1] : vector<8x256xf32> to vector<8xf32>
    %6 = vector.shape_cast %5 : vector<8xf32> to vector<8x1xf32>
    %7 = vector.broadcast %6 : vector<8x1xf32> to vector<8x256xf32>
    %8 = arith.subf %4, %7 : vector<8x256xf32>
    %9 = math.exp %8 : vector<8x256xf32>
    %c0_3 = arith.constant 0 : index
    %c0_4 = arith.constant 0 : index
    %10 = vector.load %arg2[%c0_3, %c0_4] : memref<2x256xf32, #tpu.memory_space<vmem>>, vector<1x256xf32>
    %c1 = arith.constant 1 : index
    %c0_5 = arith.constant 0 : index
    %11 = vector.load %arg2[%c1, %c0_5] : memref<2x256xf32, #tpu.memory_space<vmem>>, vector<1x256xf32>
    %cst_6 = arith.constant dense<0.000000e+00> : vector<8xf32>
    %12 = vector.multi_reduction <add>, %9, %cst_6 [1] : vector<8x256xf32> to vector<8xf32>
    %13 = vector.shape_cast %12 : vector<8xf32> to vector<8x1xf32>
    %14 = vector.broadcast %10 : vector<1x256xf32> to vector<8x256xf32>
    %15 = arith.mulf %9, %14 : vector<8x256xf32>
    %cst_7 = arith.constant dense<0.000000e+00> : vector<8xf32>
    %16 = vector.multi_reduction <add>, %15, %cst_7 [1] : vector<8x256xf32> to vector<8xf32>
    %17 = vector.shape_cast %16 : vector<8xf32> to vector<8x1xf32>
    %18 = vector.broadcast %11 : vector<1x256xf32> to vector<8x256xf32>
    %19 = arith.mulf %9, %18 : vector<8x256xf32>
    %cst_8 = arith.constant dense<0.000000e+00> : vector<8xf32>
    %20 = vector.multi_reduction <add>, %19, %cst_8 [1] : vector<8x256xf32> to vector<8xf32>
    %21 = vector.shape_cast %20 : vector<8xf32> to vector<8x1xf32>
    %22 = tpu.reciprocal %13 : vector<8x1xf32> -> vector<8x1xf32>
    %23 = arith.mulf %17, %22 : vector<8x1xf32>
    %c0_9 = arith.constant 0 : index
    %c0_10 = arith.constant 0 : index
    %24 = vector.load %arg3[%c0_9, %c0_10] : memref<8x2xf32, #tpu.memory_space<vmem>>, vector<8x1xf32>
    tpu.vector_store %arg3[%c0_9, %c0_10], %23 {strides = array<i32>} : memref<8x2xf32, #tpu.memory_space<vmem>>, vector<8x1xf32>,
    %25 = arith.mulf %21, %22 : vector<8x1xf32>
    %c0_11 = arith.constant 0 : index
    %c1_12 = arith.constant 1 : index
    %26 = vector.load %arg3[%c0_11, %c1_12] : memref<8x2xf32, #tpu.memory_space<vmem>>, vector<8x1xf32>
    tpu.vector_store %arg3[%c0_11, %c1_12], %25 {strides = array<i32>} : memref<8x2xf32, #tpu.memory_space<vmem>>, vector<8x1xf32>,
    return
  }
  func.func @transform_0(%arg0: i32) -> (i32, i32) {
    %c0_i32 = arith.constant 0 : i32
    %c0_i32_0 = arith.constant 0 : i32
    return %arg0, %c0_i32 : i32, i32
  }
  func.func @transform_1(%arg0: i32) -> (i32, i32) {
    %c0_i32 = arith.constant 0 : i32
    %c0_i32_0 = arith.constant 0 : i32
    %c0_i32_1 = arith.constant 0 : i32
    return %c0_i32, %c0_i32_0 : i32, i32
  }
  func.func @transform_2(%arg0: i32) -> (i32, i32) {
    %c0_i32 = arith.constant 0 : i32
    %c0_i32_0 = arith.constant 0 : i32
    return %arg0, %c0_i32 : i32, i32
  }
}

</mosaic_0001>

<llo_original>
// kernel: soft_argmax.1
$region0: #{soft_argmax.1}
  #allocation0 [shape = 'u32[]', space=smem, size = 0x4, offset = 0x4, fixed_abs, tag = 'smem constant byte address 0x4 - core index']
  #allocation1 [shape = 'u32[144,128]{1,0:T(1,128)}', space=vmem, size = 0x12000, scoped, tag = 'internal scratch']
  %s0 = inlined_call_operand.vmem [shape: f32[6,256], index: 0, kind: input, shape index: {}]
  %s1 = inlined_call_operand.vmem [shape: f32[2,256], index: 1, kind: input, shape index: {}]
  %s2 = inlined_call_operand.vmem [shape: f32[6,2], index: 2, kind: output, shape index: {}]
  %s3 = sld [smem:[#allocation0]]
  $region18: #{soft_argmax.1} parent=0
    _
  %s5 = ssub.s32 1, %s3
  %s6 = scalar_select 0, %s5, %s3
  // Predicated region
  $region2: #{soft_argmax.1} parent=0 // pred_check
    _
  $region3: #{soft_argmax.1} parent=0 // pred_check_branch
    %8 = sbr.rel (0) target = $region5
  $region4: #{soft_argmax.1} parent=0 // pred_region
    _
  $region5: #{soft_argmax.1} parent=0 // pred_fallthru
    _
  // Predicated region
  $region6: #{soft_argmax.1} parent=0 // pred_check
    _
  $region7: #{soft_argmax.1} parent=0 // pred_check_branch
    %10 = sbr.rel (0) target = $region9
  $region8: #{soft_argmax.1} parent=0 // pred_region
    _
  $region9: #{soft_argmax.1} parent=0 // pred_fallthru
    _
  %v11 = vld [vmem:[%s0] sm:$0xff]
  %v12 = vld [vmem:[%s0 + $0x8] sm:$0xff]
  %v13 = vmax.f32 %v11, 0.0
  %v14 = vmax.f32 %v12, 0.0
  %v15 = vmul.f32 %v13, 100.0
  %v16 = vmul.f32 %v14, 100.0
  %v17 = vmax.f32 %v15, %v16
  %18 = vmax.xlane.f32.xlu0 %v17
  %v19 = vpop.xlane.xlu0 %18
  %v20 = vsub.f32 %v15, %v19
  %v21 = vsub.f32 %v16, %v19
  %v22 = vmul.f32 %v20, 1.442695
  %v23 = vpow.pop %v22
  %v24 = vmul.f32 %v21, 1.442695
  %v25 = vpow.pop %v24
  %v26 = vld [vmem:[%s1] ss:$2 sm:$0x3]
  %s27 = scalar_lea.vmem %s1, 1
  %v28 = vld [vmem:[%s27] ss:$2 sm:$0x3]
  %v29 = vadd.f32 %v23, %v25
  %30 = vadd.xlane.f32.xlu0 %v29
  %v31 = vpop.xlane.xlu0 %30
  %v33 = vlaneseq
  %v34 = vshrl.u32 %v33, 7
  %v35 = vsub.s32 0, %v34
  %v36 = vrot.slane %v26, %v35
  %v37 = vlaneseq
  %v38 = vshrl.u32 %v37, 7
  %v39 = vsub.s32 1, %v38
  %v40 = vrot.slane %v26, %v39
  %v43 = vmul.f32 %v23, %v36
  %v44 = vmul.f32 %v25, %v40
  %v45 = vadd.f32 %v43, %v44
  %46 = vadd.xlane.f32.xlu0 %v45
  %v47 = vpop.xlane.xlu0 %46
  %v49 = vlaneseq
  %v50 = vshrl.u32 %v49, 7
  %v51 = vsub.s32 0, %v50
  %v52 = vrot.slane %v28, %v51
  %v53 = vlaneseq
  %v54 = vshrl.u32 %v53, 7
  %v55 = vsub.s32 1, %v54
  %v56 = vrot.slane %v28, %v55
  %v59 = vmul.f32 %v23, %v52
  %v60 = vmul.f32 %v25, %v56
  %v61 = vadd.f32 %v59, %v60
  %62 = vadd.xlane.f32.xlu0 %v61
  %v63 = vpop.xlane.xlu0 %62
  %v64 = vrcp.pop %v31
  %v65 = vmul.f32 %v47, %v64
  %vm66 = vcmask 7168
  %67 = vst.msk [vmem:[%s2] sm:$0xff] %vm66, %v65
  %v68 = vmul.f32 %v63, %v64
  %vm69 = vcmask 15368
  %70 = vst.msk [vmem:[%s2] sm:$0xff] %vm69, %v68
  // Predicated region
  $region10: #{soft_argmax.1} parent=0 // pred_check
    _
  $region11: #{soft_argmax.1} parent=0 // pred_check_branch
    %72 = sbr.rel (0) target = $region13
  $region12: #{soft_argmax.1} parent=0 // pred_region
    _
  $region13: #{soft_argmax.1} parent=0 // pred_fallthru
    _
  // Predicated region
  $region14: #{soft_argmax.1} parent=0 // pred_check
    _
  $region15: #{soft_argmax.1} parent=0 // pred_check_branch
    %74 = sbr.rel (0) target = $region17
  $region16: #{soft_argmax.1} parent=0 // pred_region
    _
  $region17: #{soft_argmax.1} parent=0 // pred_fallthru
    _

</llo_original>
